<compile_context>
chip_gen: v6e
topology: v6e:2x2x1
jax: 0.10.0
libtpu: 0.0.40
codegen_flags: <defaults>
</compile_context>

<pallas_src>
import functools

import jax
import jax.numpy as jnp
from jax.experimental import pallas as pl
from jax.experimental.pallas import tpu as pltpu


def _round_up(x, m):
    return (x + m - 1) // m * m


def simplenet_fused_kernel(num_actions,
                           x_ref, w1_ref, b1_ref, w2_ref, b2_ref, w3_ref, b3_ref,
                           out_ref):
    """Fused policy+baseline forward for one batch tile.

    x_ref : (TB, obs_dim)
    w1    : (obs_dim, 2h), w2: (2h, 2h) block-diag, w3: (2h, A+1) block-diag
    out   : (TB, A+1)  -- columns [0, A) = softmax probs, column A = baseline
    """
    x = x_ref[...]

    h = jnp.tanh(
        jnp.dot(x, w1_ref[...], preferred_element_type=jnp.float32) + b1_ref[...]
    )
    h = jnp.tanh(
        jnp.dot(h, w2_ref[...], preferred_element_type=jnp.float32) + b2_ref[...]
    )
    z = jnp.dot(h, w3_ref[...], preferred_element_type=jnp.float32) + b3_ref[...]

    # Masked softmax over the action columns; baseline column passes through.
    col = jax.lax.broadcasted_iota(jnp.int32, z.shape, 1)
    is_action = col < num_actions
    zm = jnp.where(is_action, z, jnp.float32(-1e30))
    m = jnp.max(zm, axis=-1, keepdims=True)
    e = jnp.exp(zm - m)                              # baseline column -> 0
    denom = jnp.sum(e, axis=-1, keepdims=True)
    probs = e * pl.reciprocal(denom, approx=True)    # EUP vrcp (free-ish slot)

    out_ref[...] = jnp.where(is_action, probs, z).astype(out_ref.dtype)


def _pack_params(params):
    """Fuse policy/baseline weights into one 3-layer chain (done once, in JAX)."""
    h = params["pw2"].shape[0]
    A = params["pw3"].shape[1]
    f32 = jnp.float32

    w1 = jnp.concatenate([params["pw1"], params["bw1"]], axis=1)      # (obs, 2h)
    b1 = jnp.concatenate([params["pb1"], params["bb1"]], axis=1)      # (1, 2h)

    zhh = jnp.zeros((h, h), f32)
    w2 = jnp.block([[params["pw2"], zhh], [zhh, params["bw2"]]])      # (2h, 2h)
    b2 = jnp.concatenate([params["pb2"], params["bb2"]], axis=1)      # (1, 2h)

    zhA = jnp.zeros((h, A), f32)
    zh1 = jnp.zeros((h, 1), f32)
    w3 = jnp.block([[params["pw3"], zh1], [zhA, params["bw3"]]])      # (2h, A+1)
    b3 = jnp.concatenate([params["pb3"], params["bb3"]], axis=1)      # (1, A+1)
    return w1, b1, w2, b2, w3, b3


@functools.partial(jax.jit, static_argnames=("block_b",))
def simplenet_forward(observation, params, block_b=1024):
    """SimpleNet forward in one Pallas kernel.

    observation: (B, obs_dim) float32
    returns: (policy_probs (B, num_actions), baseline (B,))
    """
    B, obs_dim = observation.shape
    h = params["pw2"].shape[0]
    A = params["pw3"].shape[1]

    w1, b1, w2, b2, w3, b3 = _pack_params(params)

    # Batch tile: large (default 1024 rows) for HBM pipelining; sublane-aligned.
    tb = min(block_b, _round_up(max(B, 1), 8))
    b_pad = _round_up(B, tb)
    x = observation
    if b_pad != B:
        x = jnp.pad(x, ((0, b_pad - B), (0, 0)))

    grid = (pl.cdiv(b_pad, tb),)

    def full_spec(arr):
        # Whole-array block, constant index -> stays VMEM-resident across steps.
        return pl.BlockSpec(arr.shape, lambda i: (0, 0))

    flops = 2 * b_pad * (obs_dim * 2 * h + (2 * h) * (2 * h) + 2 * h * (A + 1))
    transcendentals = b_pad * (4 * h + (A + 1) + 1)     # tanh + exp + recip
    bytes_accessed = 4 * (
        b_pad * (obs_dim + A + 1)
        + w1.size + b1.size + w2.size + b2.size + w3.size + b3.size
    )

    packed = pl.pallas_call(
        functools.partial(simplenet_fused_kernel, A),
        out_shape=jax.ShapeDtypeStruct((b_pad, A + 1), jnp.float32),
        grid=grid,
        in_specs=[
            pl.BlockSpec((tb, obs_dim), lambda i: (i, 0)),
            full_spec(w1), full_spec(b1),
            full_spec(w2), full_spec(b2),
            full_spec(w3), full_spec(b3),
        ],
        out_specs=pl.BlockSpec((tb, A + 1), lambda i: (i, 0)),
        compiler_params=pltpu.CompilerParams(
            dimension_semantics=("parallel",),
            vmem_limit_bytes=32 * 1024 * 1024,   # safe for v7x's 64 MiB VMEM
        ),
        cost_estimate=pl.CostEstimate(
            flops=flops,
            transcendentals=transcendentals,
            bytes_accessed=bytes_accessed,
        ),
    )(x, w1, b1, w2, b2, w3, b3)

    probs = packed[:B, :A]
    baseline = packed[:B, A]
    return probs, baseline


def init_params(key, obs_dim, num_actions, h_dim=32):
    """PyTorch-style uniform(-1/sqrt(fan_in), 1/sqrt(fan_in)) init.

    Weights stored as (in, out) so the kernel does x @ W + b; biases (1, out).
    """
    def linear(k, fan_in, fan_out):
        kw, kb = jax.random.split(k)
        bound = 1.0 / jnp.sqrt(jnp.float32(fan_in))
        w = jax.random.uniform(kw, (fan_in, fan_out), jnp.float32, -bound, bound)
        b = jax.random.uniform(kb, (1, fan_out), jnp.float32, -bound, bound)
        return w, b

    keys = jax.random.split(key, 6)
    pw1, pb1 = linear(keys[0], obs_dim, h_dim)
    pw2, pb2 = linear(keys[1], h_dim, h_dim)
    pw3, pb3 = linear(keys[2], h_dim, num_actions)   # rlego.SoftmaxPolicy linear
    bw1, bb1 = linear(keys[3], obs_dim, h_dim)
    bw2, bb2 = linear(keys[4], h_dim, h_dim)
    bw3, bb3 = linear(keys[5], h_dim, 1)
    return dict(
        pw1=pw1, pb1=pb1, pw2=pw2, pb2=pb2, pw3=pw3, pb3=pb3,
        bw1=bw1, bb1=bb1, bw2=bw2, bb2=bb2, bw3=bw3, bb3=bb3,
    )


def _reference_forward(observation, params):
    """Pure-JAX reference of the original (unfused) SimpleNet forward."""
    hp = jnp.tanh(observation @ params["pw1"] + params["pb1"])
    hp = jnp.tanh(hp @ params["pw2"] + params["pb2"])
    logits = hp @ params["pw3"] + params["pb3"]
    probs = jax.nn.softmax(logits, axis=-1)

    hb = jnp.tanh(observation @ params["bw1"] + params["bb1"])
    hb = jnp.tanh(hb @ params["bw2"] + params["bb2"])
    baseline = jnp.squeeze(hb @ params["bw3"] + params["bb3"], axis=-1)
    return probs, baseline


if __name__ == "__main__":
    obs_dim, num_actions, h_dim = 16, 4, 32

    key = jax.random.PRNGKey(0)
    k_obs, k_params = jax.random.split(key)
    params = init_params(k_params, obs_dim, num_actions, h_dim)

    ok = True
    for batch in (8, 6):   # 6 exercises the ragged-batch padding path
        observation = jax.random.normal(
            jax.random.fold_in(k_obs, batch), (batch, obs_dim), jnp.float32)

        policy_probs, baseline = simplenet_forward(observation, params)
        jax.block_until_ready((policy_probs, baseline))

        assert policy_probs.shape == (batch, num_actions)
        assert baseline.shape == (batch,)
        # approx reciprocal -> rows sum to 1 only to ~1e-3
        assert jnp.allclose(jnp.sum(policy_probs, axis=-1), 1.0, atol=1e-2)

        ref_probs, ref_baseline = _reference_forward(observation, params)
        ok &= bool(jnp.allclose(policy_probs, ref_probs, atol=1e-2))
        ok &= bool(jnp.allclose(baseline, ref_baseline, atol=1e-2))

    assert ok
    print("KERNEL_OK")
</pallas_src>

<mosaic_0001>
module attributes {stable_mosaic.version = 11 : i64} {
  func.func @simplenet_fused_kernel(%arg0: i32, %arg1: memref<8x16xf32, #tpu.memory_space<vmem>>, %arg2: memref<16x64xf32, #tpu.memory_space<vmem>>, %arg3: memref<1x64xf32, #tpu.memory_space<vmem>>, %arg4: memref<64x64xf32, #tpu.memory_space<vmem>>, %arg5: memref<1x64xf32, #tpu.memory_space<vmem>>, %arg6: memref<64x5xf32, #tpu.memory_space<vmem>>, %arg7: memref<1x5xf32, #tpu.memory_space<vmem>>, %arg8: memref<8x5xf32, #tpu.memory_space<vmem>>) attributes {dimension_semantics = [#tpu.dimension_semantics<parallel>], iteration_bounds = array<i64: 1>, scalar_prefetch = 0 : i64, scratch_operands = 0 : i64, tpu.core_type = #tpu.core_type<tc>, window_params = [{transform_indices = @transform_0, window_bounds = array<i64: 8, 16>}, {pipeline_mode = #tpu.pipeline_mode<synchronous>, transform_indices = @transform_1, window_bounds = array<i64: 16, 64>}, {pipeline_mode = #tpu.pipeline_mode<synchronous>, transform_indices = @transform_2, window_bounds = array<i64: 1, 64>}, {pipeline_mode = #tpu.pipeline_mode<synchronous>, transform_indices = @transform_3, window_bounds = array<i64: 64, 64>}, {pipeline_mode = #tpu.pipeline_mode<synchronous>, transform_indices = @transform_4, window_bounds = array<i64: 1, 64>}, {pipeline_mode = #tpu.pipeline_mode<synchronous>, transform_indices = @transform_5, window_bounds = array<i64: 64, 5>}, {pipeline_mode = #tpu.pipeline_mode<synchronous>, transform_indices = @transform_6, window_bounds = array<i64: 1, 5>}, {transform_indices = @transform_7, window_bounds = array<i64: 8, 5>}]} {
    %c0 = arith.constant 0 : index
    %c0_0 = arith.constant 0 : index
    %0 = vector.load %arg1[%c0, %c0_0] : memref<8x16xf32, #tpu.memory_space<vmem>>, vector<8x16xf32>
    %c0_1 = arith.constant 0 : index
    %c0_2 = arith.constant 0 : index
    %1 = vector.load %arg2[%c0_1, %c0_2] : memref<16x64xf32, #tpu.memory_space<vmem>>, vector<16x64xf32>
    %cst = arith.constant dense<0.000000e+00> : vector<8x64xf32>
    %2 = tpu.matmul %0, %1, %cst {dimension_numbers = #tpu.dot_dimension_numbers<[1], [0], [0], [1], [0, 0, 1, 1], [], []>} : vector<8x16xf32>, vector<16x64xf32>, vector<8x64xf32> -> vector<8x64xf32>
    %c0_3 = arith.constant 0 : index
    %c0_4 = arith.constant 0 : index
    %3 = vector.load %arg3[%c0_3, %c0_4] : memref<1x64xf32, #tpu.memory_space<vmem>>, vector<1x64xf32>
    %4 = vector.broadcast %3 : vector<1x64xf32> to vector<8x64xf32>
    %5 = arith.addf %2, %4 : vector<8x64xf32>
    %6 = math.tanh %5 : vector<8x64xf32>
    %c0_5 = arith.constant 0 : index
    %c0_6 = arith.constant 0 : index
    %7 = vector.load %arg4[%c0_5, %c0_6] : memref<64x64xf32, #tpu.memory_space<vmem>>, vector<64x64xf32>
    %cst_7 = arith.constant dense<0.000000e+00> : vector<8x64xf32>
    %8 = tpu.matmul %6, %7, %cst_7 {dimension_numbers = #tpu.dot_dimension_numbers<[1], [0], [0], [1], [0, 0, 1, 1], [], []>} : vector<8x64xf32>, vector<64x64xf32>, vector<8x64xf32> -> vector<8x64xf32>
    %c0_8 = arith.constant 0 : index
    %c0_9 = arith.constant 0 : index
    %9 = vector.load %arg5[%c0_8, %c0_9] : memref<1x64xf32, #tpu.memory_space<vmem>>, vector<1x64xf32>
    %10 = vector.broadcast %9 : vector<1x64xf32> to vector<8x64xf32>
    %11 = arith.addf %8, %10 : vector<8x64xf32>
    %12 = math.tanh %11 : vector<8x64xf32>
    %c0_10 = arith.constant 0 : index
    %c0_11 = arith.constant 0 : index
    %13 = vector.load %arg6[%c0_10, %c0_11] : memref<64x5xf32, #tpu.memory_space<vmem>>, vector<64x5xf32>
    %cst_12 = arith.constant dense<0.000000e+00> : vector<8x5xf32>
    %14 = tpu.matmul %12, %13, %cst_12 {dimension_numbers = #tpu.dot_dimension_numbers<[1], [0], [0], [1], [0, 0, 1, 1], [], []>} : vector<8x64xf32>, vector<64x5xf32>, vector<8x5xf32> -> vector<8x5xf32>
    %c0_13 = arith.constant 0 : index
    %c0_14 = arith.constant 0 : index
    %15 = vector.load %arg7[%c0_13, %c0_14] : memref<1x5xf32, #tpu.memory_space<vmem>>, vector<1x5xf32>
    %16 = vector.broadcast %15 : vector<1x5xf32> to vector<8x5xf32>
    %17 = arith.addf %14, %16 : vector<8x5xf32>
    %18 = tpu.iota {dimensions = array<i32: 1>} : vector<8x5xi32>
    %c4_i32 = arith.constant 4 : i32
    %19 = vector.broadcast %c4_i32 : i32 to vector<8x5xi32>
    %20 = arith.cmpi slt, %18, %19 : vector<8x5xi32>
    %cst_15 = arith.constant -1.000000e+30 : f32
    %21 = vector.broadcast %cst_15 : f32 to vector<8x5xf32>
    %22 = arith.select %20, %17, %21 : vector<8x5xi1>, vector<8x5xf32>
    %cst_16 = arith.constant dense<0xFF800000> : vector<8xf32>
    %23 = vector.multi_reduction <maximumf>, %22, %cst_16 [1] : vector<8x5xf32> to vector<8xf32>
    %24 = vector.shape_cast %23 : vector<8xf32> to vector<8x1xf32>
    %25 = vector.broadcast %24 : vector<8x1xf32> to vector<8x5xf32>
    %26 = arith.subf %22, %25 : vector<8x5xf32>
    %27 = math.exp %26 : vector<8x5xf32>
    %cst_17 = arith.constant dense<0.000000e+00> : vector<8xf32>
    %28 = vector.multi_reduction <add>, %27, %cst_17 [1] : vector<8x5xf32> to vector<8xf32>
    %29 = vector.shape_cast %28 : vector<8xf32> to vector<8x1xf32>
    %30 = tpu.reciprocal %29 {approx = true} : vector<8x1xf32> -> vector<8x1xf32>
    %31 = vector.broadcast %30 : vector<8x1xf32> to vector<8x5xf32>
    %32 = arith.mulf %27, %31 : vector<8x5xf32>
    %33 = arith.select %20, %32, %17 : vector<8x5xi1>, vector<8x5xf32>
    %c0_18 = arith.constant 0 : index
    %c0_19 = arith.constant 0 : index
    %34 = vector.load %arg8[%c0_18, %c0_19] : memref<8x5xf32, #tpu.memory_space<vmem>>, vector<8x5xf32>
    tpu.vector_store %arg8[%c0_18, %c0_19], %33 {strides = array<i32>} : memref<8x5xf32, #tpu.memory_space<vmem>>, vector<8x5xf32>,
    return
  }
  func.func @transform_0(%arg0: i32) -> (i32, i32) {
    %c0_i32 = arith.constant 0 : i32
    %c0_i32_0 = arith.constant 0 : i32
    return %arg0, %c0_i32 : i32, i32
  }
  func.func @transform_1(%arg0: i32) -> (i32, i32) {
    %c0_i32 = arith.constant 0 : i32
    %c0_i32_0 = arith.constant 0 : i32
    %c0_i32_1 = arith.constant 0 : i32
    return %c0_i32, %c0_i32_0 : i32, i32
  }
  func.func @transform_2(%arg0: i32) -> (i32, i32) {
    %c0_i32 = arith.constant 0 : i32
    %c0_i32_0 = arith.constant 0 : i32
    %c0_i32_1 = arith.constant 0 : i32
    return %c0_i32, %c0_i32_0 : i32, i32
  }
  func.func @transform_3(%arg0: i32) -> (i32, i32) {
    %c0_i32 = arith.constant 0 : i32
    %c0_i32_0 = arith.constant 0 : i32
    %c0_i32_1 = arith.constant 0 : i32
    return %c0_i32, %c0_i32_0 : i32, i32
  }
  func.func @transform_4(%arg0: i32) -> (i32, i32) {
    %c0_i32 = arith.constant 0 : i32
    %c0_i32_0 = arith.constant 0 : i32
    %c0_i32_1 = arith.constant 0 : i32
    return %c0_i32, %c0_i32_0 : i32, i32
  }
  func.func @transform_5(%arg0: i32) -> (i32, i32) {
    %c0_i32 = arith.constant 0 : i32
    %c0_i32_0 = arith.constant 0 : i32
    %c0_i32_1 = arith.constant 0 : i32
    return %c0_i32, %c0_i32_0 : i32, i32
  }
  func.func @transform_6(%arg0: i32) -> (i32, i32) {
    %c0_i32 = arith.constant 0 : i32
    %c0_i32_0 = arith.constant 0 : i32
    %c0_i32_1 = arith.constant 0 : i32
    return %c0_i32, %c0_i32_0 : i32, i32
  }
  func.func @transform_7(%arg0: i32) -> (i32, i32) {
    %c0_i32 = arith.constant 0 : i32
    %c0_i32_0 = arith.constant 0 : i32
    return %arg0, %c0_i32 : i32, i32
  }
}

</mosaic_0001>

<llo_original>
// kernel: simplenet_forward.1
$region0: #{simplenet_forward.1}
  #allocation0 [shape = 'u32[]', space=smem, size = 0x4, offset = 0x4, fixed_abs, tag = 'smem constant byte address 0x4 - core index']
  #allocation1 [shape = 'u32[144,128]{1,0:T(1,128)}', space=vmem, size = 0x12000, scoped, tag = 'internal scratch']
  %s0 = inlined_call_operand.vmem [shape: f32[8,16], index: 0, kind: input, shape index: {}]
  %s1 = inlined_call_operand.vmem [shape: f32[16,64], index: 1, kind: input, shape index: {}]
  %s2 = inlined_call_operand.vmem [shape: f32[1,64], index: 2, kind: input, shape index: {}]
  %s3 = inlined_call_operand.vmem [shape: f32[64,64], index: 3, kind: input, shape index: {}]
  %s4 = inlined_call_operand.vmem [shape: f32[1,64], index: 4, kind: input, shape index: {}]
  %s5 = inlined_call_operand.vmem [shape: f32[64,5], index: 5, kind: input, shape index: {}]
  %s6 = inlined_call_operand.vmem [shape: f32[1,5], index: 6, kind: input, shape index: {}]
  %s7 = inlined_call_operand.vmem [shape: f32[8,5], index: 7, kind: output, shape index: {}]
  %s8 = sld [smem:[#allocation0]]
  $region38: #{simplenet_forward.1} parent=0
    _
  %s10 = ssub.s32 1, %s8
  %s11 = scalar_select 0, %s10, %s8
  // Predicated region
  $region2: #{simplenet_forward.1} parent=0 // pred_check
    _
  $region3: #{simplenet_forward.1} parent=0 // pred_check_branch
    %13 = sbr.rel (0) target = $region5
  $region4: #{simplenet_forward.1} parent=0 // pred_region
    _
  $region5: #{simplenet_forward.1} parent=0 // pred_fallthru
    _
  // Predicated region
  $region6: #{simplenet_forward.1} parent=0 // pred_check
    _
  $region7: #{simplenet_forward.1} parent=0 // pred_check_branch
    %15 = sbr.rel (0) target = $region9
  $region8: #{simplenet_forward.1} parent=0 // pred_region
    _
  $region9: #{simplenet_forward.1} parent=0 // pred_fallthru
    _
  // Predicated region
  $region10: #{simplenet_forward.1} parent=0 // pred_check
    _
  $region11: #{simplenet_forward.1} parent=0 // pred_check_branch
    %17 = sbr.rel (0) target = $region13
  $region12: #{simplenet_forward.1} parent=0 // pred_region
    _
  $region13: #{simplenet_forward.1} parent=0 // pred_fallthru
    _
  // Predicated region
  $region14: #{simplenet_forward.1} parent=0 // pred_check
    _
  $region15: #{simplenet_forward.1} parent=0 // pred_check_branch
    %19 = sbr.rel (0) target = $region17
  $region16: #{simplenet_forward.1} parent=0 // pred_region
    _
  $region17: #{simplenet_forward.1} parent=0 // pred_fallthru
    _
  // Predicated region
  $region18: #{simplenet_forward.1} parent=0 // pred_check
    _
  $region19: #{simplenet_forward.1} parent=0 // pred_check_branch
    %21 = sbr.rel (0) target = $region21
  $region20: #{simplenet_forward.1} parent=0 // pred_region
    _
  $region21: #{simplenet_forward.1} parent=0 // pred_fallthru
    _
  // Predicated region
  $region22: #{simplenet_forward.1} parent=0 // pred_check
    _
  $region23: #{simplenet_forward.1} parent=0 // pred_check_branch
    %23 = sbr.rel (0) target = $region25
  $region24: #{simplenet_forward.1} parent=0 // pred_region
    _
  $region25: #{simplenet_forward.1} parent=0 // pred_fallthru
    _
  // Predicated region
  $region26: #{simplenet_forward.1} parent=0 // pred_check
    _
  $region27: #{simplenet_forward.1} parent=0 // pred_check_branch
    %25 = sbr.rel (0) target = $region29
  $region28: #{simplenet_forward.1} parent=0 // pred_region
    _
  $region29: #{simplenet_forward.1} parent=0 // pred_fallthru
    _
  %v26 = vld [vmem:[%s0] sm:$0xff]
  %v27 = vld [vmem:[%s1] sm:$0xff]
  %v28 = vld [vmem:[%s1 + $0x8] sm:$0xff]
  %v29 = vld [vmem:[%s2] sm:$0x1]
  %v31 = vlaneseq
  %v32 = vshrl.u32 %v31, 7
  %v33 = vsub.s32 0, %v32
  %v34 = vrot.slane %v29, %v33
  %vm36 = vcmask 130048
  %v38 = vsel %vm36, %v26, 0
  %40 = vmatprep.subr.mxu0 0.0
  %41 = vmatpush1.msra.mxu0 0.0
  %42 = vmatprep.subr.mxu0 0.0
  %43 = vmatpush1.msra.mxu0 0.0
  %44 = vmatprep.subr.mxu0 0.0
  %45 = vmatpush1.msra.mxu0 0.0
  %46 = vmatprep.subr.mxu0 0.0
  %47 = vmatpush1.msra.mxu0 0.0
  %48 = vmatprep.subr.mxu0 0.0
  %49 = vmatpush1.msra.mxu0 0.0
  %50 = vmatprep.subr.mxu0 0.0
  %51 = vmatpush1.msra.mxu0 0.0
  %52 = vmatprep.subr.mxu0 0.0
  %53 = vmatpush1.msra.mxu0 0.0
  %54 = vmatprep.subr.mxu0 0.0
  %55 = vmatpush1.msra.mxu0 0.0
  %56 = vmatprep.subr.mxu0 0.0
  %57 = vmatpush1.msra.mxu0 0.0
  %58 = vmatprep.subr.mxu0 0.0
  %59 = vmatpush1.msra.mxu0 0.0
  %60 = vmatprep.subr.mxu0 0.0
  %61 = vmatpush1.msra.mxu0 0.0
  %62 = vmatprep.subr.mxu0 0.0
  %63 = vmatpush1.msra.mxu0 0.0
  %64 = vmatprep.subr.mxu0 0.0
  %65 = vmatpush1.msra.mxu0 0.0
  %66 = vmatprep.subr.mxu0 0.0
  %67 = vmatpush1.msra.mxu0 0.0
  %68 = vmatprep.subr.mxu0 0.0
  %69 = vmatpush1.msra.mxu0 %v28
  %70 = vmatprep.subr.mxu0 0.0
  %71 = vmatpush1.msra.mxu0 %v27
  %72 = vmatprep.subr.mxu0 0.0
  %73 = vmatpush2.msra.mxu0 0.0
  %74 = vmatprep.subr.mxu0 0.0
  %75 = vmatpush2.msra.mxu0 0.0
  %76 = vmatprep.subr.mxu0 0.0
  %77 = vmatpush2.msra.mxu0 0.0
  %78 = vmatprep.subr.mxu0 0.0
  %79 = vmatpush2.msra.mxu0 0.0
  %80 = vmatprep.subr.mxu0 0.0
  %81 = vmatpush2.msra.mxu0 0.0
  %82 = vmatprep.subr.mxu0 0.0
  %83 = vmatpush2.msra.mxu0 0.0
  %84 = vmatprep.subr.mxu0 0.0
  %85 = vmatpush2.msra.mxu0 0.0
  %86 = vmatprep.subr.mxu0 0.0
  %87 = vmatpush2.msra.mxu0 0.0
  %88 = vmatprep.subr.mxu0 0.0
  %89 = vmatpush2.msra.mxu0 0.0
  %90 = vmatprep.subr.mxu0 0.0
  %91 = vmatpush2.msra.mxu0 0.0
  %92 = vmatprep.subr.mxu0 0.0
  %93 = vmatpush2.msra.mxu0 0.0
  %94 = vmatprep.subr.mxu0 0.0
  %95 = vmatpush2.msra.mxu0 0.0
  %96 = vmatprep.subr.mxu0 0.0
  %97 = vmatpush2.msra.mxu0 0.0
  %98 = vmatprep.subr.mxu0 0.0
  %99 = vmatpush2.msra.mxu0 0.0
  %100 = vmatprep.subr.mxu0 0.0
  %101 = vmatpush2.msra.mxu0 0.0
  %102 = vmatprep.subr.mxu0 0.0
  %103 = vmatpush2.msra.mxu0 0.0
  %104 = vmatprep.mubr.f32.mxu0 0.0
  %105 = vmatmul.mubr.f32.gmra.mxu0 %v38
  %v106 = vpop.f32.mrf.mxu0
  %v107 = vadd.f32 %v34, %v106
  %v108 = vpop.f32.mrf.mxu0
  %109 = vdwg.mxu0
  %v110 = vtanh.pop %v107
  %v111 = vld [vmem:[%s3] sm:$0xff]
  %v112 = vld [vmem:[%s3 + $0x8] sm:$0xff]
  %v113 = vld [vmem:[%s3 + $0x10] sm:$0xff]
  %v114 = vld [vmem:[%s3 + $0x18] sm:$0xff]
  %v115 = vld [vmem:[%s3 + $0x20] sm:$0xff]
  %v116 = vld [vmem:[%s3 + $0x28] sm:$0xff]
  %v117 = vld [vmem:[%s3 + $0x30] sm:$0xff]
  %v118 = vld [vmem:[%s3 + $0x38] sm:$0xff]
  %v119 = vld [vmem:[%s4] sm:$0x1]
  %v121 = vlaneseq
  %v122 = vshrl.u32 %v121, 7
  %v123 = vsub.s32 0, %v122
  %v124 = vrot.slane %v119, %v123
  %vm126 = vcmask 523264
  %v128 = vsel %vm126, %v110, 0
  %130 = vmatprep.subr.mxu0 0.0
  %131 = vmatpush1.msra.mxu0 0.0
  %132 = vmatprep.subr.mxu0 0.0
  %133 = vmatpush1.msra.mxu0 0.0
  %134 = vmatprep.subr.mxu0 0.0
  %135 = vmatpush1.msra.mxu0 0.0
  %136 = vmatprep.subr.mxu0 0.0
  %137 = vmatpush1.msra.mxu0 0.0
  %138 = vmatprep.subr.mxu0 0.0
  %139 = vmatpush1.msra.mxu0 0.0
  %140 = vmatprep.subr.mxu0 0.0
  %141 = vmatpush1.msra.mxu0 0.0
  %142 = vmatprep.subr.mxu0 0.0
  %143 = vmatpush1.msra.mxu0 0.0
  %144 = vmatprep.subr.mxu0 0.0
  %145 = vmatpush1.msra.mxu0 0.0
  %146 = vmatprep.subr.mxu0 0.0
  %147 = vmatpush1.msra.mxu0 %v118
  %148 = vmatprep.subr.mxu0 0.0
  %149 = vmatpush1.msra.mxu0 %v117
  %150 = vmatprep.subr.mxu0 0.0
  %151 = vmatpush1.msra.mxu0 %v116
  %152 = vmatprep.subr.mxu0 0.0
  %153 = vmatpush1.msra.mxu0 %v115
  %154 = vmatprep.subr.mxu0 0.0
  %155 = vmatpush1.msra.mxu0 %v114
  %156 = vmatprep.subr.mxu0 0.0
  %157 = vmatpush1.msra.mxu0 %v113
  %158 = vmatprep.subr.mxu0 0.0
  %159 = vmatpush1.msra.mxu0 %v112
  %160 = vmatprep.subr.mxu0 0.0
  %161 = vmatpush1.msra.mxu0 %v111
  %162 = vmatprep.subr.mxu0 0.0
  %163 = vmatpush2.msra.mxu0 0.0
  %164 = vmatprep.subr.mxu0 0.0
  %165 = vmatpush2.msra.mxu0 0.0
  %166 = vmatprep.subr.mxu0 0.0
  %167 = vmatpush2.msra.mxu0 0.0
  %168 = vmatprep.subr.mxu0 0.0
  %169 = vmatpush2.msra.mxu0 0.0
  %170 = vmatprep.subr.mxu0 0.0
  %171 = vmatpush2.msra.mxu0 0.0
  %172 = vmatprep.subr.mxu0 0.0
  %173 = vmatpush2.msra.mxu0 0.0
  %174 = vmatprep.subr.mxu0 0.0
  %175 = vmatpush2.msra.mxu0 0.0
  %176 = vmatprep.subr.mxu0 0.0
  %177 = vmatpush2.msra.mxu0 0.0
  %178 = vmatprep.subr.mxu0 0.0
  %179 = vmatpush2.msra.mxu0 0.0
  %180 = vmatprep.subr.mxu0 0.0
  %181 = vmatpush2.msra.mxu0 0.0
  %182 = vmatprep.subr.mxu0 0.0
  %183 = vmatpush2.msra.mxu0 0.0
  %184 = vmatprep.subr.mxu0 0.0
  %185 = vmatpush2.msra.mxu0 0.0
  %186 = vmatprep.subr.mxu0 0.0
  %187 = vmatpush2.msra.mxu0 0.0
  %188 = vmatprep.subr.mxu0 0.0
  %189 = vmatpush2.msra.mxu0 0.0
  %190 = vmatprep.subr.mxu0 0.0
  %191 = vmatpush2.msra.mxu0 0.0
  %192 = vmatprep.subr.mxu0 0.0
  %193 = vmatpush2.msra.mxu0 0.0
  %194 = vmatprep.mubr.f32.mxu0 0.0
  %195 = vmatmul.mubr.f32.gmra.mxu0 %v128
  %v196 = vpop.f32.mrf.mxu0
  %v197 = vadd.f32 %v124, %v196
  %v198 = vpop.f32.mrf.mxu0
  %199 = vdwg.mxu0
  %v200 = vtanh.pop %v197
  %v201 = vld [vmem:[%s5] sm:$0xff]
  %v202 = vld [vmem:[%s5 + $0x8] sm:$0xff]
  %v203 = vld [vmem:[%s5 + $0x10] sm:$0xff]
  %v204 = vld [vmem:[%s5 + $0x18] sm:$0xff]
  %v205 = vld [vmem:[%s5 + $0x20] sm:$0xff]
  %v206 = vld [vmem:[%s5 + $0x28] sm:$0xff]
  %v207 = vld [vmem:[%s5 + $0x30] sm:$0xff]
  %v208 = vld [vmem:[%s5 + $0x38] sm:$0xff]
  %v209 = vld [vmem:[%s6] sm:$0x1]
  %v211 = vlaneseq
  %v212 = vshrl.u32 %v211, 7
  %v213 = vsub.s32 0, %v212
  %v214 = vrot.slane %v209, %v213
  %v217 = vsel %vm126, %v200, 0
  %219 = vmatprep.subr.mxu0 0.0
  %220 = vmatpush1.msra.mxu0 0.0
  %221 = vmatprep.subr.mxu0 0.0
  %222 = vmatpush1.msra.mxu0 0.0
  %223 = vmatprep.subr.mxu0 0.0
  %224 = vmatpush1.msra.mxu0 0.0
  %225 = vmatprep.subr.mxu0 0.0
  %226 = vmatpush1.msra.mxu0 0.0
  %227 = vmatprep.subr.mxu0 0.0
  %228 = vmatpush1.msra.mxu0 0.0
  %229 = vmatprep.subr.mxu0 0.0
  %230 = vmatpush1.msra.mxu0 0.0
  %231 = vmatprep.subr.mxu0 0.0
  %232 = vmatpush1.msra.mxu0 0.0
  %233 = vmatprep.subr.mxu0 0.0
  %234 = vmatpush1.msra.mxu0 0.0
  %235 = vmatprep.subr.mxu0 0.0
  %236 = vmatpush1.msra.mxu0 %v208
  %237 = vmatprep.subr.mxu0 0.0
  %238 = vmatpush1.msra.mxu0 %v207
  %239 = vmatprep.subr.mxu0 0.0
  %240 = vmatpush1.msra.mxu0 %v206
  %241 = vmatprep.subr.mxu0 0.0
  %242 = vmatpush1.msra.mxu0 %v205
  %243 = vmatprep.subr.mxu0 0.0
  %244 = vmatpush1.msra.mxu0 %v204
  %245 = vmatprep.subr.mxu0 0.0
  %246 = vmatpush1.msra.mxu0 %v203
  %247 = vmatprep.subr.mxu0 0.0
  %248 = vmatpush1.msra.mxu0 %v202
  %249 = vmatprep.subr.mxu0 0.0
  %250 = vmatpush1.msra.mxu0 %v201
  %251 = vmatprep.subr.mxu0 0.0
  %252 = vmatpush2.msra.mxu0 0.0
  %253 = vmatprep.subr.mxu0 0.0
  %254 = vmatpush2.msra.mxu0 0.0
  %255 = vmatprep.subr.mxu0 0.0
  %256 = vmatpush2.msra.mxu0 0.0
  %257 = vmatprep.subr.mxu0 0.0
  %258 = vmatpush2.msra.mxu0 0.0
  %259 = vmatprep.subr.mxu0 0.0
  %260 = vmatpush2.msra.mxu0 0.0
  %261 = vmatprep.subr.mxu0 0.0
  %262 = vmatpush2.msra.mxu0 0.0
  %263 = vmatprep.subr.mxu0 0.0
  %264 = vmatpush2.msra.mxu0 0.0
  %265 = vmatprep.subr.mxu0 0.0
  %266 = vmatpush2.msra.mxu0 0.0
  %267 = vmatprep.subr.mxu0 0.0
  %268 = vmatpush2.msra.mxu0 0.0
  %269 = vmatprep.subr.mxu0 0.0
  %270 = vmatpush2.msra.mxu0 0.0
  %271 = vmatprep.subr.mxu0 0.0
  %272 = vmatpush2.msra.mxu0 0.0
  %273 = vmatprep.subr.mxu0 0.0
  %274 = vmatpush2.msra.mxu0 0.0
  %275 = vmatprep.subr.mxu0 0.0
  %276 = vmatpush2.msra.mxu0 0.0
  %277 = vmatprep.subr.mxu0 0.0
  %278 = vmatpush2.msra.mxu0 0.0
  %279 = vmatprep.subr.mxu0 0.0
  %280 = vmatpush2.msra.mxu0 0.0
  %281 = vmatprep.subr.mxu0 0.0
  %282 = vmatpush2.msra.mxu0 0.0
  %283 = vmatprep.mubr.f32.mxu0 0.0
  %284 = vmatmul.mubr.f32.gmra.mxu0 %v217
  %v285 = vpop.f32.mrf.mxu0
  %v286 = vadd.f32 %v214, %v285
  %v287 = vpop.f32.mrf.mxu0
  %288 = vdwg.mxu0
  %v289 = vlaneseq
  %v290 = vand.u32 %v289, 127
  %vm291 = vcmp.lt.s32.totalorder %v290, 4
  %v292 = vsel %vm291, %v286, -1e+30
  %vm293 = vcmask 39936
  %v294 = vsel %vm293, %v292, -inf
  %295 = vmax.xlane.f32.xlu0 %v294
  %v296 = vpop.xlane.xlu0 %295
  %v297 = vsub.f32 %v292, %v296
  %v298 = vmul.f32 %v297, 1.442695
  %v299 = vpow.pop %v298
  %v300 = vsel %vm293, %v299, 0.0
  %301 = vadd.xlane.f32.xlu0 %v300
  %v302 = vpop.xlane.xlu0 %301
  %v303 = vrcp.pop %v302
  %v304 = vmul.f32 %v299, %v303
  %v305 = vsel %vm291, %v304, %v286
  %306 = vst.msk [vmem:[%s7] sm:$0xff] %vm293, %v305
  // Predicated region
  $region30: #{simplenet_forward.1} parent=0 // pred_check
    _
  $region31: #{simplenet_forward.1} parent=0 // pred_check_branch
    %308 = sbr.rel (0) target = $region33
  $region32: #{simplenet_forward.1} parent=0 // pred_region
    _
  $region33: #{simplenet_forward.1} parent=0 // pred_fallthru
    _
  // Predicated region
  $region34: #{simplenet_forward.1} parent=0 // pred_check
    _
  $region35: #{simplenet_forward.1} parent=0 // pred_check_branch
    %310 = sbr.rel (0) target = $region37
  $region36: #{simplenet_forward.1} parent=0 // pred_region
    _
  $region37: #{simplenet_forward.1} parent=0 // pred_fallthru
    _

</llo_original>
